<compile_context>
chip_gen: v5e
topology: v5e:2x2
jax: 0.10.0
libtpu: 0.0.40
codegen_flags: <defaults>
</compile_context>

<pallas_src>
import jax
import jax.numpy as jnp
from jax import lax
from jax.experimental import pallas as pl
from jax.experimental.pallas import tpu as pltpu


# ----------------------------------------------------------------------------
# Genotype (normal cell): list of (op_name, input_state_index), concat indices.
# ----------------------------------------------------------------------------
GENOTYPE_NORMAL = [
    ("skip_connect", 0), ("avg_pool_3x3", 1),
    ("max_pool_3x3", 0), ("skip_connect", 1),
    ("avg_pool_3x3", 2), ("skip_connect", 3),
    ("max_pool_3x3", 2), ("avg_pool_3x3", 4),
]
GENOTYPE_NORMAL_CONCAT = [2, 3, 4, 5]
BN_EPS = 1e-5
_NEG = -1e30  # "minus infinity" fill for max-pool boundary terms


# ----------------------------------------------------------------------------
# Fused cell kernel factory.  All shapes static; genotype unrolled at trace time.
# Layout: rows = batch*channel (sublanes), cols = flattened H*W (lanes).
# ----------------------------------------------------------------------------
def _make_cell_kernel(H, W, C, Nb, Cpp, Cp):
    HW = H * W
    K0 = Nb * Cpp            # contraction size of preprocess0 (batch-block-diag)
    K1 = Nb * Cp             # contraction size of preprocess1
    R = Nb * C               # rows of every intermediate state
    n_cat = len(GENOTYPE_NORMAL_CONCAT)

    def kernel(x0_ref, x1_ref, p_ref, o_ref):
        # ---- boundary masks + exact inverse window counts (in-kernel, no aux DMA) ----
        col = lax.broadcasted_iota(jnp.int32, (R, HW), 1)   # lane index (purely spatial)
        if (W & (W - 1)) == 0:                               # power-of-2 fast path
            wi = col & (W - 1)
            hi = col >> (W.bit_length() - 1)
        else:
            wi = col % W
            hi = col // W
        m_l = wi > 0                   # has left  neighbor
        m_r = wi < (W - 1)             # has right neighbor
        m_u = hi > 0                   # has up    neighbor
        m_d = hi < (H - 1)             # has down  neighbor
        cnt_w = 1.0 + m_l.astype(jnp.float32) + m_r.astype(jnp.float32)
        cnt_h = 1.0 + m_u.astype(jnp.float32) + m_d.astype(jnp.float32)
        inv = 1.0 / (cnt_w * cnt_h)    # exact 1/valid-count (count_include_pad=False)

        def nbr(x, shift, mask, fill):
            # out[p] = x[p - shift] (circular roll on lanes); wrap killed by `mask`.
            return jnp.where(mask, pltpu.roll(x, shift, axis=1), fill)

        def max3(x):  # 3x3 max pool, stride 1, pad 1 (separable: W then H)
            xw = jnp.maximum(x, jnp.maximum(nbr(x, 1, m_l, _NEG),
                                            nbr(x, HW - 1, m_r, _NEG)))
            return jnp.maximum(xw, jnp.maximum(nbr(xw, W, m_u, _NEG),
                                               nbr(xw, HW - W, m_d, _NEG)))

        def avg3(x):  # 3x3 avg pool, stride 1, pad 1, count_include_pad=False
            xw = x + nbr(x, 1, m_l, 0.0) + nbr(x, HW - 1, m_r, 0.0)
            return (xw + nbr(xw, W, m_u, 0.0) + nbr(xw, HW - W, m_d, 0.0)) * inv

        def apply_op(name, x):
            if name == "skip_connect":
                return x
            if name == "max_pool_3x3":
                return max3(x)
            if name == "avg_pool_3x3":
                return avg3(x)
            # TODO(synk): sep_conv_*/dil_conv_* not needed for this genotype.
            raise NotImplementedError(name)

        # ---- packed params: [W0_blockdiag | W1_blockdiag | b0 | b1 | zero-pad] ----
        p = p_ref[...]                                  # (R, lanes)
        w0b = p[:, :K0]                                 # (R, Nb*Cpp)
        w1b = p[:, K0:K0 + K1]                          # (R, Nb*Cp)
        b0 = p[:, K0 + K1:K0 + K1 + 1]                  # (R, 1)
        b1 = p[:, K0 + K1 + 1:K0 + K1 + 2]              # (R, 1)

        # ---- ReLUConvBN(1x1) preprocesses: one block-diag (over batch) matmul each ----
        s0 = jnp.dot(w0b, jnp.maximum(x0_ref[...], 0.0),
                     preferred_element_type=jnp.float32) + b0
        s1 = jnp.dot(w1b, jnp.maximum(x1_ref[...], 0.0),
                     preferred_element_type=jnp.float32) + b1

        states = [s0, s1]
        for i in range(len(GENOTYPE_NORMAL) // 2):
            op1, i1 = GENOTYPE_NORMAL[2 * i]
            op2, i2 = GENOTYPE_NORMAL[2 * i + 1]
            states.append(apply_op(op1, states[i1]) + apply_op(op2, states[i2]))

        # ---- concat written directly into the output ref (static full-tile stores) ----
        for nb in range(Nb):
            base = nb * n_cat * C
            for k, idx in enumerate(GENOTYPE_NORMAL_CONCAT):
                o_ref[base + k * C: base + (k + 1) * C, :] = \
                    states[idx][nb * C:(nb + 1) * C, :]

    return kernel


# ----------------------------------------------------------------------------
# Full cell forward (single Pallas call).
#   batch_chunks=1  -> one grid step (best on single-TC v5e/v6e).
#   batch_chunks=2  -> two "parallel" steps (shards across v7x's two TensorCores).
# ----------------------------------------------------------------------------
def cnn_cell_eval_forward(params, s0_nchw, s1_nchw, drop_prob=0.0, batch_chunks=1):
    # eval mode: drop_path is skipped (matches PyTorch when not training / p==0)
    del drop_prob
    N, Cpp, H, W = s0_nchw.shape
    _, Cp, _, _ = s1_nchw.shape
    C = params["w0"].shape[0]
    n_cat = len(GENOTYPE_NORMAL_CONCAT)
    HW = H * W

    assert N % batch_chunks == 0
    Nb = N // batch_chunks
    # TODO(synk): pad sublane/lane dims if these do not hold for other shapes.
    assert HW % 128 == 0 and (Nb * C) % 8 == 0 and (Nb * Cpp) % 8 == 0 and (Nb * Cp) % 8 == 0

    # NCHW with (batch, channel) folded onto sublanes and H*W onto lanes: free reshapes.
    x0 = s0_nchw.reshape(N * Cpp, HW).astype(jnp.float32)
    x1 = s1_nchw.reshape(N * Cp, HW).astype(jnp.float32)

    # Fold BN scale into the 1x1-conv weights (eval-mode constant fold) and pack
    # everything into a single lane-aligned param slab.
    w0e = (params["w0"] * params["scale0"][:, None]).astype(jnp.float32)   # (C, Cpp)
    w1e = (params["w1"] * params["scale1"][:, None]).astype(jnp.float32)   # (C, Cp)
    K0, K1 = Nb * Cpp, Nb * Cp
    lanes = ((K0 + K1 + 2 + 127) // 128) * 128
    eye = jnp.eye(Nb, dtype=jnp.float32)
    slab = jnp.zeros((Nb * C, lanes), jnp.float32)
    slab = slab.at[:, :K0].set(jnp.kron(eye, w0e))                 # block-diag over batch
    slab = slab.at[:, K0:K0 + K1].set(jnp.kron(eye, w1e))
    slab = slab.at[:, K0 + K1].set(jnp.tile(params["bias0"].astype(jnp.float32), Nb))
    slab = slab.at[:, K0 + K1 + 1].set(jnp.tile(params["bias1"].astype(jnp.float32), Nb))

    kernel = _make_cell_kernel(H, W, C, Nb, Cpp, Cp)
    out = pl.pallas_call(
        kernel,
        out_shape=jax.ShapeDtypeStruct((N * n_cat * C, HW), jnp.float32),
        grid=(batch_chunks,),
        in_specs=[
            pl.BlockSpec((Nb * Cpp, HW), lambda g: (g, 0)),
            pl.BlockSpec((Nb * Cp, HW), lambda g: (g, 0)),
            pl.BlockSpec((Nb * C, lanes), lambda g: (0, 0)),
        ],
        out_specs=pl.BlockSpec((Nb * n_cat * C, HW), lambda g: (g, 0)),
        compiler_params=pltpu.CompilerParams(
            dimension_semantics=("parallel",)),     # shards chunks across v7x TCs
    )(x0, x1, slab)

    return out.reshape(N, n_cat * C, H, W)          # free reshape back to NCHW


# ----------------------------------------------------------------------------
# Pure-JAX reference (correctness check only)
# ----------------------------------------------------------------------------
def cnn_cell_eval_reference(params, s0_nchw, s1_nchw):
    def rcb(x, w, sc, b):
        y = jnp.einsum("oc,nchw->nohw", w, jnp.maximum(x, 0.0))
        return y * sc[None, :, None, None] + b[None, :, None, None]

    def pool(x, op):
        dims, strides = (1, 1, 3, 3), (1, 1, 1, 1)
        pad = ((0, 0), (0, 0), (1, 1), (1, 1))
        if op == "max_pool_3x3":
            return lax.reduce_window(x, -jnp.inf, lax.max, dims, strides, pad)
        s = lax.reduce_window(x, 0.0, lax.add, dims, strides, pad)
        c = lax.reduce_window(jnp.ones_like(x), 0.0, lax.add, dims, strides, pad)
        return s / c

    def ref_op(x, op):
        return x if op == "skip_connect" else pool(x, op)

    x0 = s0_nchw.astype(jnp.float32)
    x1 = s1_nchw.astype(jnp.float32)
    s0 = rcb(x0, params["w0"], params["scale0"], params["bias0"])
    s1 = rcb(x1, params["w1"], params["scale1"], params["bias1"])
    states = [s0, s1]
    for i in range(len(GENOTYPE_NORMAL) // 2):
        op1, i1 = GENOTYPE_NORMAL[2 * i]
        op2, i2 = GENOTYPE_NORMAL[2 * i + 1]
        states.append(ref_op(states[i1], op1) + ref_op(states[i2], op2))
    return jnp.concatenate([states[i] for i in GENOTYPE_NORMAL_CONCAT], axis=1)


# ----------------------------------------------------------------------------
# Deterministic parameter construction (ReLUConvBN: conv w/o bias + BN folded)
# ----------------------------------------------------------------------------
def make_preprocess_params(key, c_in, c_out):
    k_w, k_g, k_b, k_m, k_v = jax.random.split(key, 5)
    # PyTorch conv weight layout (C_out, C_in, 1, 1) -> (C_out, C_in)
    w_pt = 0.1 * jax.random.normal(k_w, (c_out, c_in, 1, 1), jnp.float32)
    w = w_pt[:, :, 0, 0]
    gamma = jax.random.uniform(k_g, (c_out,), jnp.float32, 0.5, 1.5)
    beta = 0.1 * jax.random.normal(k_b, (c_out,), jnp.float32)
    mean = 0.1 * jax.random.normal(k_m, (c_out,), jnp.float32)
    var = jax.random.uniform(k_v, (c_out,), jnp.float32, 0.5, 1.5)
    scale = gamma / jnp.sqrt(var + BN_EPS)
    bias = beta - mean * scale
    return w, scale, bias


if __name__ == "__main__":
    N, C_prev_prev, C_prev, C, H, W = 2, 16, 16, 8, 16, 16   # H*W = 256 lanes

    key = jax.random.PRNGKey(0)
    k0, k1, kx0, kx1 = jax.random.split(key, 4)

    w0, scale0, bias0 = make_preprocess_params(k0, C_prev_prev, C)
    w1, scale1, bias1 = make_preprocess_params(k1, C_prev, C)
    params = dict(w0=w0, scale0=scale0, bias0=bias0,
                  w1=w1, scale1=scale1, bias1=bias1)

    s0 = jax.random.normal(kx0, (N, C_prev_prev, H, W), jnp.float32)  # NCHW
    s1 = jax.random.normal(kx1, (N, C_prev, H, W), jnp.float32)       # NCHW

    expected_shape = (N, C * len(GENOTYPE_NORMAL_CONCAT), H, W)
    ref = jax.block_until_ready(cnn_cell_eval_reference(params, s0, s1))

    # Single grid step (v5e/v6e default): whole batch in one block.
    fwd1 = jax.jit(lambda p, a, b: cnn_cell_eval_forward(p, a, b, batch_chunks=1))
    out1 = jax.block_until_ready(fwd1(params, s0, s1))
    assert out1.shape == expected_shape, (out1.shape, expected_shape)
    assert jnp.allclose(out1, ref, rtol=1e-3, atol=1e-3), "mismatch (batch_chunks=1)"

    # Two "parallel" steps (v7x megacore config): one batch chunk per TensorCore.
    fwd2 = jax.jit(lambda p, a, b: cnn_cell_eval_forward(p, a, b, batch_chunks=2))
    out2 = jax.block_until_ready(fwd2(params, s0, s1))
    assert out2.shape == expected_shape, (out2.shape, expected_shape)
    assert jnp.allclose(out2, ref, rtol=1e-3, atol=1e-3), "mismatch (batch_chunks=2)"

    print("KERNEL_OK")
</pallas_src>

<mosaic_0001>
module attributes {stable_mosaic.version = 11 : i64} {
  func.func @kernel(%arg0: i32, %arg1: memref<32x256xf32, #tpu.memory_space<vmem>>, %arg2: memref<32x256xf32, #tpu.memory_space<vmem>>, %arg3: memref<16x128xf32, #tpu.memory_space<vmem>>, %arg4: memref<64x256xf32, #tpu.memory_space<vmem>>) attributes {dimension_semantics = [#tpu.dimension_semantics<parallel>], iteration_bounds = array<i64: 1>, scalar_prefetch = 0 : i64, scratch_operands = 0 : i64, tpu.core_type = #tpu.core_type<tc>, window_params = [{transform_indices = @transform_0, window_bounds = array<i64: 32, 256>}, {transform_indices = @transform_1, window_bounds = array<i64: 32, 256>}, {pipeline_mode = #tpu.pipeline_mode<synchronous>, transform_indices = @transform_2, window_bounds = array<i64: 16, 128>}, {transform_indices = @transform_3, window_bounds = array<i64: 64, 256>}]} {
    %0 = tpu.iota {dimensions = array<i32: 1>} : vector<16x256xi32>
    %c15_i32 = arith.constant 15 : i32
    %1 = vector.broadcast %c15_i32 : i32 to vector<16x256xi32>
    %2 = arith.andi %0, %1 : vector<16x256xi32>
    %c4_i32 = arith.constant 4 : i32
    %3 = vector.broadcast %c4_i32 : i32 to vector<16x256xi32>
    %4 = arith.shrsi %0, %3 : vector<16x256xi32>
    %c0_i32 = arith.constant 0 : i32
    %5 = vector.broadcast %c0_i32 : i32 to vector<16x256xi32>
    %6 = arith.cmpi sgt, %2, %5 : vector<16x256xi32>
    %c15_i32_0 = arith.constant 15 : i32
    %7 = vector.broadcast %c15_i32_0 : i32 to vector<16x256xi32>
    %8 = arith.cmpi slt, %2, %7 : vector<16x256xi32>
    %c0_i32_1 = arith.constant 0 : i32
    %9 = vector.broadcast %c0_i32_1 : i32 to vector<16x256xi32>
    %10 = arith.cmpi sgt, %4, %9 : vector<16x256xi32>
    %c15_i32_2 = arith.constant 15 : i32
    %11 = vector.broadcast %c15_i32_2 : i32 to vector<16x256xi32>
    %12 = arith.cmpi slt, %4, %11 : vector<16x256xi32>
    %13 = arith.extui %6 : vector<16x256xi1> to vector<16x256xi32>
    %14 = arith.sitofp %13 : vector<16x256xi32> to vector<16x256xf32>
    %cst = arith.constant 1.000000e+00 : f32
    %15 = vector.broadcast %cst : f32 to vector<16x256xf32>
    %16 = arith.addf %15, %14 : vector<16x256xf32>
    %17 = arith.extui %8 : vector<16x256xi1> to vector<16x256xi32>
    %18 = arith.sitofp %17 : vector<16x256xi32> to vector<16x256xf32>
    %19 = arith.addf %16, %18 : vector<16x256xf32>
    %20 = arith.extui %10 : vector<16x256xi1> to vector<16x256xi32>
    %21 = arith.sitofp %20 : vector<16x256xi32> to vector<16x256xf32>
    %cst_3 = arith.constant 1.000000e+00 : f32
    %22 = vector.broadcast %cst_3 : f32 to vector<16x256xf32>
    %23 = arith.addf %22, %21 : vector<16x256xf32>
    %24 = arith.extui %12 : vector<16x256xi1> to vector<16x256xi32>
    %25 = arith.sitofp %24 : vector<16x256xi32> to vector<16x256xf32>
    %26 = arith.addf %23, %25 : vector<16x256xf32>
    %27 = arith.mulf %19, %26 : vector<16x256xf32>
    %cst_4 = arith.constant 1.000000e+00 : f32
    %28 = vector.broadcast %cst_4 : f32 to vector<16x256xf32>
    %29 = arith.divf %28, %27 : vector<16x256xf32>
    %c0 = arith.constant 0 : index
    %c0_5 = arith.constant 0 : index
    %30 = vector.load %arg3[%c0, %c0_5] : memref<16x128xf32, #tpu.memory_space<vmem>>, vector<16x128xf32>
    %31 = vector.extract_strided_slice %30 {offsets = [0, 0], sizes = [16, 32], strides = [1, 1]} : vector<16x128xf32> to vector<16x32xf32>
    %32 = vector.extract_strided_slice %30 {offsets = [0, 32], sizes = [16, 32], strides = [1, 1]} : vector<16x128xf32> to vector<16x32xf32>
    %33 = vector.extract_strided_slice %30 {offsets = [0, 64], sizes = [16, 1], strides = [1, 1]} : vector<16x128xf32> to vector<16x1xf32>
    %34 = vector.extract_strided_slice %30 {offsets = [0, 65], sizes = [16, 1], strides = [1, 1]} : vector<16x128xf32> to vector<16x1xf32>
    %c0_6 = arith.constant 0 : index
    %c0_7 = arith.constant 0 : index
    %35 = vector.load %arg1[%c0_6, %c0_7] : memref<32x256xf32, #tpu.memory_space<vmem>>, vector<32x256xf32>
    %cst_8 = arith.constant 0.000000e+00 : f32
    %36 = vector.broadcast %cst_8 : f32 to vector<32x256xf32>
    %37 = arith.maximumf %35, %36 : vector<32x256xf32>
    %cst_9 = arith.constant dense<0.000000e+00> : vector<16x256xf32>
    %38 = tpu.matmul %31, %37, %cst_9 {dimension_numbers = #tpu.dot_dimension_numbers<[1], [0], [0], [1], [0, 0, 1, 1], [], []>} : vector<16x32xf32>, vector<32x256xf32>, vector<16x256xf32> -> vector<16x256xf32>
    %39 = vector.broadcast %33 : vector<16x1xf32> to vector<16x256xf32>
    %40 = arith.addf %38, %39 : vector<16x256xf32>
    %c0_10 = arith.constant 0 : index
    %c0_11 = arith.constant 0 : index
    %41 = vector.load %arg2[%c0_10, %c0_11] : memref<32x256xf32, #tpu.memory_space<vmem>>, vector<32x256xf32>
    %cst_12 = arith.constant 0.000000e+00 : f32
    %42 = vector.broadcast %cst_12 : f32 to vector<32x256xf32>
    %43 = arith.maximumf %41, %42 : vector<32x256xf32>
    %cst_13 = arith.constant dense<0.000000e+00> : vector<16x256xf32>
    %44 = tpu.matmul %32, %43, %cst_13 {dimension_numbers = #tpu.dot_dimension_numbers<[1], [0], [0], [1], [0, 0, 1, 1], [], []>} : vector<16x32xf32>, vector<32x256xf32>, vector<16x256xf32> -> vector<16x256xf32>
    %45 = vector.broadcast %34 : vector<16x1xf32> to vector<16x256xf32>
    %46 = arith.addf %44, %45 : vector<16x256xf32>
    %c1_i32 = arith.constant 1 : i32
    %47 = tpu.dynamic_rotate %46 by %c1_i32 dim 1 : vector<16x256xf32>, i32 -> vector<16x256xf32>
    %cst_14 = arith.constant 0.000000e+00 : f32
    %48 = vector.broadcast %cst_14 : f32 to vector<16x256xf32>
    %49 = arith.select %6, %47, %48 : vector<16x256xi1>, vector<16x256xf32>
    %50 = arith.addf %46, %49 : vector<16x256xf32>
    %c255_i32 = arith.constant 255 : i32
    %51 = tpu.dynamic_rotate %46 by %c255_i32 dim 1 : vector<16x256xf32>, i32 -> vector<16x256xf32>
    %cst_15 = arith.constant 0.000000e+00 : f32
    %52 = vector.broadcast %cst_15 : f32 to vector<16x256xf32>
    %53 = arith.select %8, %51, %52 : vector<16x256xi1>, vector<16x256xf32>
    %54 = arith.addf %50, %53 : vector<16x256xf32>
    %c16_i32 = arith.constant 16 : i32
    %55 = tpu.dynamic_rotate %54 by %c16_i32 dim 1 : vector<16x256xf32>, i32 -> vector<16x256xf32>
    %cst_16 = arith.constant 0.000000e+00 : f32
    %56 = vector.broadcast %cst_16 : f32 to vector<16x256xf32>
    %57 = arith.select %10, %55, %56 : vector<16x256xi1>, vector<16x256xf32>
    %58 = arith.addf %54, %57 : vector<16x256xf32>
    %c240_i32 = arith.constant 240 : i32
    %59 = tpu.dynamic_rotate %54 by %c240_i32 dim 1 : vector<16x256xf32>, i32 -> vector<16x256xf32>
    %cst_17 = arith.constant 0.000000e+00 : f32
    %60 = vector.broadcast %cst_17 : f32 to vector<16x256xf32>
    %61 = arith.select %12, %59, %60 : vector<16x256xi1>, vector<16x256xf32>
    %62 = arith.addf %58, %61 : vector<16x256xf32>
    %63 = arith.mulf %62, %29 : vector<16x256xf32>
    %64 = arith.addf %40, %63 : vector<16x256xf32>
    %c1_i32_18 = arith.constant 1 : i32
    %65 = tpu.dynamic_rotate %40 by %c1_i32_18 dim 1 : vector<16x256xf32>, i32 -> vector<16x256xf32>
    %cst_19 = arith.constant -1.000000e+30 : f32
    %66 = vector.broadcast %cst_19 : f32 to vector<16x256xf32>
    %67 = arith.select %6, %65, %66 : vector<16x256xi1>, vector<16x256xf32>
    %c255_i32_20 = arith.constant 255 : i32
    %68 = tpu.dynamic_rotate %40 by %c255_i32_20 dim 1 : vector<16x256xf32>, i32 -> vector<16x256xf32>
    %cst_21 = arith.constant -1.000000e+30 : f32
    %69 = vector.broadcast %cst_21 : f32 to vector<16x256xf32>
    %70 = arith.select %8, %68, %69 : vector<16x256xi1>, vector<16x256xf32>
    %71 = arith.maximumf %67, %70 : vector<16x256xf32>
    %72 = arith.maximumf %40, %71 : vector<16x256xf32>
    %c16_i32_22 = arith.constant 16 : i32
    %73 = tpu.dynamic_rotate %72 by %c16_i32_22 dim 1 : vector<16x256xf32>, i32 -> vector<16x256xf32>
    %cst_23 = arith.constant -1.000000e+30 : f32
    %74 = vector.broadcast %cst_23 : f32 to vector<16x256xf32>
    %75 = arith.select %10, %73, %74 : vector<16x256xi1>, vector<16x256xf32>
    %c240_i32_24 = arith.constant 240 : i32
    %76 = tpu.dynamic_rotate %72 by %c240_i32_24 dim 1 : vector<16x256xf32>, i32 -> vector<16x256xf32>
    %cst_25 = arith.constant -1.000000e+30 : f32
    %77 = vector.broadcast %cst_25 : f32 to vector<16x256xf32>
    %78 = arith.select %12, %76, %77 : vector<16x256xi1>, vector<16x256xf32>
    %79 = arith.maximumf %75, %78 : vector<16x256xf32>
    %80 = arith.maximumf %72, %79 : vector<16x256xf32>
    %81 = arith.addf %80, %46 : vector<16x256xf32>
    %c1_i32_26 = arith.constant 1 : i32
    %82 = tpu.dynamic_rotate %64 by %c1_i32_26 dim 1 : vector<16x256xf32>, i32 -> vector<16x256xf32>
    %cst_27 = arith.constant 0.000000e+00 : f32
    %83 = vector.broadcast %cst_27 : f32 to vector<16x256xf32>
    %84 = arith.select %6, %82, %83 : vector<16x256xi1>, vector<16x256xf32>
    %85 = arith.addf %64, %84 : vector<16x256xf32>
    %c255_i32_28 = arith.constant 255 : i32
    %86 = tpu.dynamic_rotate %64 by %c255_i32_28 dim 1 : vector<16x256xf32>, i32 -> vector<16x256xf32>
    %cst_29 = arith.constant 0.000000e+00 : f32
    %87 = vector.broadcast %cst_29 : f32 to vector<16x256xf32>
    %88 = arith.select %8, %86, %87 : vector<16x256xi1>, vector<16x256xf32>
    %89 = arith.addf %85, %88 : vector<16x256xf32>
    %c16_i32_30 = arith.constant 16 : i32
    %90 = tpu.dynamic_rotate %89 by %c16_i32_30 dim 1 : vector<16x256xf32>, i32 -> vector<16x256xf32>
    %cst_31 = arith.constant 0.000000e+00 : f32
    %91 = vector.broadcast %cst_31 : f32 to vector<16x256xf32>
    %92 = arith.select %10, %90, %91 : vector<16x256xi1>, vector<16x256xf32>
    %93 = arith.addf %89, %92 : vector<16x256xf32>
    %c240_i32_32 = arith.constant 240 : i32
    %94 = tpu.dynamic_rotate %89 by %c240_i32_32 dim 1 : vector<16x256xf32>, i32 -> vector<16x256xf32>
    %cst_33 = arith.constant 0.000000e+00 : f32
    %95 = vector.broadcast %cst_33 : f32 to vector<16x256xf32>
    %96 = arith.select %12, %94, %95 : vector<16x256xi1>, vector<16x256xf32>
    %97 = arith.addf %93, %96 : vector<16x256xf32>
    %98 = arith.mulf %97, %29 : vector<16x256xf32>
    %99 = arith.addf %98, %81 : vector<16x256xf32>
    %c1_i32_34 = arith.constant 1 : i32
    %100 = tpu.dynamic_rotate %64 by %c1_i32_34 dim 1 : vector<16x256xf32>, i32 -> vector<16x256xf32>
    %cst_35 = arith.constant -1.000000e+30 : f32
    %101 = vector.broadcast %cst_35 : f32 to vector<16x256xf32>
    %102 = arith.select %6, %100, %101 : vector<16x256xi1>, vector<16x256xf32>
    %c255_i32_36 = arith.constant 255 : i32
    %103 = tpu.dynamic_rotate %64 by %c255_i32_36 dim 1 : vector<16x256xf32>, i32 -> vector<16x256xf32>
    %cst_37 = arith.constant -1.000000e+30 : f32
    %104 = vector.broadcast %cst_37 : f32 to vector<16x256xf32>
    %105 = arith.select %8, %103, %104 : vector<16x256xi1>, vector<16x256xf32>
    %106 = arith.maximumf %102, %105 : vector<16x256xf32>
    %107 = arith.maximumf %64, %106 : vector<16x256xf32>
    %c16_i32_38 = arith.constant 16 : i32
    %108 = tpu.dynamic_rotate %107 by %c16_i32_38 dim 1 : vector<16x256xf32>, i32 -> vector<16x256xf32>
    %cst_39 = arith.constant -1.000000e+30 : f32
    %109 = vector.broadcast %cst_39 : f32 to vector<16x256xf32>
    %110 = arith.select %10, %108, %109 : vector<16x256xi1>, vector<16x256xf32>
    %c240_i32_40 = arith.constant 240 : i32
    %111 = tpu.dynamic_rotate %107 by %c240_i32_40 dim 1 : vector<16x256xf32>, i32 -> vector<16x256xf32>
    %cst_41 = arith.constant -1.000000e+30 : f32
    %112 = vector.broadcast %cst_41 : f32 to vector<16x256xf32>
    %113 = arith.select %12, %111, %112 : vector<16x256xi1>, vector<16x256xf32>
    %114 = arith.maximumf %110, %113 : vector<16x256xf32>
    %115 = arith.maximumf %107, %114 : vector<16x256xf32>
    %c1_i32_42 = arith.constant 1 : i32
    %116 = tpu.dynamic_rotate %99 by %c1_i32_42 dim 1 : vector<16x256xf32>, i32 -> vector<16x256xf32>
    %cst_43 = arith.constant 0.000000e+00 : f32
    %117 = vector.broadcast %cst_43 : f32 to vector<16x256xf32>
    %118 = arith.select %6, %116, %117 : vector<16x256xi1>, vector<16x256xf32>
    %119 = arith.addf %99, %118 : vector<16x256xf32>
    %c255_i32_44 = arith.constant 255 : i32
    %120 = tpu.dynamic_rotate %99 by %c255_i32_44 dim 1 : vector<16x256xf32>, i32 -> vector<16x256xf32>
    %cst_45 = arith.constant 0.000000e+00 : f32
    %121 = vector.broadcast %cst_45 : f32 to vector<16x256xf32>
    %122 = arith.select %8, %120, %121 : vector<16x256xi1>, vector<16x256xf32>
    %123 = arith.addf %119, %122 : vector<16x256xf32>
    %c16_i32_46 = arith.constant 16 : i32
    %124 = tpu.dynamic_rotate %123 by %c16_i32_46 dim 1 : vector<16x256xf32>, i32 -> vector<16x256xf32>
    %cst_47 = arith.constant 0.000000e+00 : f32
    %125 = vector.broadcast %cst_47 : f32 to vector<16x256xf32>
    %126 = arith.select %10, %124, %125 : vector<16x256xi1>, vector<16x256xf32>
    %127 = arith.addf %123, %126 : vector<16x256xf32>
    %c240_i32_48 = arith.constant 240 : i32
    %128 = tpu.dynamic_rotate %123 by %c240_i32_48 dim 1 : vector<16x256xf32>, i32 -> vector<16x256xf32>
    %cst_49 = arith.constant 0.000000e+00 : f32
    %129 = vector.broadcast %cst_49 : f32 to vector<16x256xf32>
    %130 = arith.select %12, %128, %129 : vector<16x256xi1>, vector<16x256xf32>
    %131 = arith.addf %127, %130 : vector<16x256xf32>
    %132 = arith.mulf %131, %29 : vector<16x256xf32>
    %133 = arith.addf %115, %132 : vector<16x256xf32>
    %134 = vector.extract_strided_slice %64 {offsets = [0, 0], sizes = [8, 256], strides = [1, 1]} : vector<16x256xf32> to vector<8x256xf32>
    %c0_50 = arith.constant 0 : index
    %c0_51 = arith.constant 0 : index
    %135 = vector.load %arg4[%c0_50, %c0_51] : memref<64x256xf32, #tpu.memory_space<vmem>>, vector<8x256xf32>
    tpu.vector_store %arg4[%c0_50, %c0_51], %134 {strides = array<i32>} : memref<64x256xf32, #tpu.memory_space<vmem>>, vector<8x256xf32>,
    %136 = vector.extract_strided_slice %81 {offsets = [0, 0], sizes = [8, 256], strides = [1, 1]} : vector<16x256xf32> to vector<8x256xf32>
    %c8 = arith.constant 8 : index
    %c0_52 = arith.constant 0 : index
    %137 = vector.load %arg4[%c8, %c0_52] : memref<64x256xf32, #tpu.memory_space<vmem>>, vector<8x256xf32>
    tpu.vector_store %arg4[%c8, %c0_52], %136 {strides = array<i32>} : memref<64x256xf32, #tpu.memory_space<vmem>>, vector<8x256xf32>,
    %138 = vector.extract_strided_slice %99 {offsets = [0, 0], sizes = [8, 256], strides = [1, 1]} : vector<16x256xf32> to vector<8x256xf32>
    %c16 = arith.constant 16 : index
    %c0_53 = arith.constant 0 : index
    %139 = vector.load %arg4[%c16, %c0_53] : memref<64x256xf32, #tpu.memory_space<vmem>>, vector<8x256xf32>
    tpu.vector_store %arg4[%c16, %c0_53], %138 {strides = array<i32>} : memref<64x256xf32, #tpu.memory_space<vmem>>, vector<8x256xf32>,
    %140 = vector.extract_strided_slice %133 {offsets = [0, 0], sizes = [8, 256], strides = [1, 1]} : vector<16x256xf32> to vector<8x256xf32>
    %c24 = arith.constant 24 : index
    %c0_54 = arith.constant 0 : index
    %141 = vector.load %arg4[%c24, %c0_54] : memref<64x256xf32, #tpu.memory_space<vmem>>, vector<8x256xf32>
    tpu.vector_store %arg4[%c24, %c0_54], %140 {strides = array<i32>} : memref<64x256xf32, #tpu.memory_space<vmem>>, vector<8x256xf32>,
    %142 = vector.extract_strided_slice %64 {offsets = [8, 0], sizes = [8, 256], strides = [1, 1]} : vector<16x256xf32> to vector<8x256xf32>
    %c32 = arith.constant 32 : index
    %c0_55 = arith.constant 0 : index
    %143 = vector.load %arg4[%c32, %c0_55] : memref<64x256xf32, #tpu.memory_space<vmem>>, vector<8x256xf32>
    tpu.vector_store %arg4[%c32, %c0_55], %142 {strides = array<i32>} : memref<64x256xf32, #tpu.memory_space<vmem>>, vector<8x256xf32>,
    %144 = vector.extract_strided_slice %81 {offsets = [8, 0], sizes = [8, 256], strides = [1, 1]} : vector<16x256xf32> to vector<8x256xf32>
    %c40 = arith.constant 40 : index
    %c0_56 = arith.constant 0 : index
    %145 = vector.load %arg4[%c40, %c0_56] : memref<64x256xf32, #tpu.memory_space<vmem>>, vector<8x256xf32>
    tpu.vector_store %arg4[%c40, %c0_56], %144 {strides = array<i32>} : memref<64x256xf32, #tpu.memory_space<vmem>>, vector<8x256xf32>,
    %146 = vector.extract_strided_slice %99 {offsets = [8, 0], sizes = [8, 256], strides = [1, 1]} : vector<16x256xf32> to vector<8x256xf32>
    %c48 = arith.constant 48 : index
    %c0_57 = arith.constant 0 : index
    %147 = vector.load %arg4[%c48, %c0_57] : memref<64x256xf32, #tpu.memory_space<vmem>>, vector<8x256xf32>
    tpu.vector_store %arg4[%c48, %c0_57], %146 {strides = array<i32>} : memref<64x256xf32, #tpu.memory_space<vmem>>, vector<8x256xf32>,
    %148 = vector.extract_strided_slice %133 {offsets = [8, 0], sizes = [8, 256], strides = [1, 1]} : vector<16x256xf32> to vector<8x256xf32>
    %c56 = arith.constant 56 : index
    %c0_58 = arith.constant 0 : index
    %149 = vector.load %arg4[%c56, %c0_58] : memref<64x256xf32, #tpu.memory_space<vmem>>, vector<8x256xf32>
    tpu.vector_store %arg4[%c56, %c0_58], %148 {strides = array<i32>} : memref<64x256xf32, #tpu.memory_space<vmem>>, vector<8x256xf32>,
    return
  }
  func.func @transform_0(%arg0: i32) -> (i32, i32) {
    %c0_i32 = arith.constant 0 : i32
    %c0_i32_0 = arith.constant 0 : i32
    return %arg0, %c0_i32 : i32, i32
  }
  func.func @transform_1(%arg0: i32) -> (i32, i32) {
    %c0_i32 = arith.constant 0 : i32
    %c0_i32_0 = arith.constant 0 : i32
    return %arg0, %c0_i32 : i32, i32
  }
  func.func @transform_2(%arg0: i32) -> (i32, i32) {
    %c0_i32 = arith.constant 0 : i32
    %c0_i32_0 = arith.constant 0 : i32
    %c0_i32_1 = arith.constant 0 : i32
    return %c0_i32, %c0_i32_0 : i32, i32
  }
  func.func @transform_3(%arg0: i32) -> (i32, i32) {
    %c0_i32 = arith.constant 0 : i32
    %c0_i32_0 = arith.constant 0 : i32
    return %arg0, %c0_i32 : i32, i32
  }
}

</mosaic_0001>

<llo_original>
// kernel: tile.13
$region0: #{tile.13}
  #allocation2 [shape = 's32[1]{0}', space=sflag, size = 0x4, scoped, tag = 'scoped memory for tile.13']
  %s0 = inlined_call_operand.hbm [shape: f32[8], index: 0, kind: input, shape index: {}]
  %s1 = inlined_call_operand.vmem [shape: f32[2,8], index: 1, kind: output, shape index: {}]
  $region1: #{tile.13} parent=0
    #allocation0 [shape = 'u8[512]{0}', space=vmem, size = 0x400, scoped, tag = 'operand span for operand 0']
    #allocation1 [shape = 's32[1]{0}', space=sflag, size = 0x4, scoped, tag = 'scoped memory for tile.13']
    %2 = vsyncpa [#allocation1], 0
    // Predicated region
    $region2: #{tile.13} parent=1 // pred_check
      _
    $region3: #{tile.13} parent=1 // pred_check_branch
      %4 = sbr.rel (0) target = $region5
    $region4: #{tile.13} parent=1 // pred_region
      %6 = vsyncadd [#allocation1], 0
      %s8 = sshll.u32 %s0, 4
      %s9 = int_to_ptr.hbm [resolvable:$true] %s8
      %s10 = sshll.u32 [#allocation0], 4
      %s11 = int_to_ptr.vmem [resolvable:$true] %s10
      %13 = dma.hbm_to_vmem [thread:$0]  %s9, 16, %s11, [#allocation1]
    $region5: #{tile.13} parent=1 // pred_fallthru
      _
    // Predicated region
    $region6: #{tile.13} parent=1 // pred_check
      _
    $region7: #{tile.13} parent=1 // pred_check_branch
      %15 = sbr.rel (0) target = $region9
    $region8: #{tile.13} parent=1 // pred_region
      %17 = dma.done [#allocation1], 16
    $region9: #{tile.13} parent=1 // pred_fallthru
      _
    %v18 = vld [vmem:[#allocation0] ss:$0 sm:$0xff]
    %19 = vst [vmem:[%s1] sm:$0x3] %v18
    %20 = vsyncpa [#allocation1], 1

// kernel: tile.18
$region0: #{tile.18}
  #allocation0 [shape = 's32[1]{0}', space=sflag, size = 0x4, scoped, tag = 'scoped memory for tile.18']
  %s0 = inlined_call_operand.vmem [shape: f32[8], index: 0, kind: input, shape index: {}]
  %s1 = inlined_call_operand.vmem [shape: f32[2,8], index: 1, kind: output, shape index: {}]
  // Predicated region
  $region2: #{tile.18} parent=0 // pred_check
    _
  $region3: #{tile.18} parent=0 // pred_check_branch
    %3 = sbr.rel (0) target = $region5
  $region4: #{tile.18} parent=0 // pred_region
    _
  $region5: #{tile.18} parent=0 // pred_fallthru
    _
  %v4 = vld [vmem:[%s0] ss:$0 sm:$0xff]
  %5 = vst [vmem:[%s1] sm:$0x3] %v4

// kernel: _lambda_.1
$region0: #{_lambda_.1}
  #allocation0 [shape = 'u32[]', space=smem, size = 0x4, offset = 0x4, fixed_abs, tag = 'smem constant byte address 0x4 - core index']
  #allocation1 [shape = 'u32[72,128]{1,0:T(1,128)}', space=vmem, size = 0x9000, scoped, tag = 'internal scratch']
  %s0 = inlined_call_operand.vmem [shape: f32[32,256], index: 0, kind: input, shape index: {}]
  %s1 = inlined_call_operand.vmem [shape: f32[32,256], index: 1, kind: input, shape index: {}]
  %s2 = inlined_call_operand.vmem [shape: f32[16,128], index: 2, kind: input, shape index: {}]
  %s3 = inlined_call_operand.vmem [shape: f32[64,256], index: 3, kind: output, shape index: {}]
  %s4 = sld [smem:[#allocation0]]
  $region22: #{_lambda_.1} parent=0
    _
  %s6 = ssub.s32 1, %s4
  %s7 = scalar_select 0, %s6, %s4
  // Predicated region
  $region2: #{_lambda_.1} parent=0 // pred_check
    _
  $region3: #{_lambda_.1} parent=0 // pred_check_branch
    %9 = sbr.rel (0) target = $region5
  $region4: #{_lambda_.1} parent=0 // pred_region
    _
  $region5: #{_lambda_.1} parent=0 // pred_fallthru
    _
  // Predicated region
  $region6: #{_lambda_.1} parent=0 // pred_check
    _
  $region7: #{_lambda_.1} parent=0 // pred_check_branch
    %11 = sbr.rel (0) target = $region9
  $region8: #{_lambda_.1} parent=0 // pred_region
    _
  $region9: #{_lambda_.1} parent=0 // pred_fallthru
    _
  // Predicated region
  $region10: #{_lambda_.1} parent=0 // pred_check
    _
  $region11: #{_lambda_.1} parent=0 // pred_check_branch
    %13 = sbr.rel (0) target = $region13
  $region12: #{_lambda_.1} parent=0 // pred_region
    _
  $region13: #{_lambda_.1} parent=0 // pred_fallthru
    _
  %v14 = vlaneseq
  %v15 = vand.u32 %v14, 127
  %v16 = vadd.s32 %v15, 128
  %v17 = vand.u32 %v15, 15
  %v18 = vand.u32 %v16, 15
  %v19 = vshra.s32 %v15, 4
  %v20 = vshra.s32 %v16, 4
  %vm21 = vcmp.gt.s32.totalorder %v17, 0
  %vm22 = vcmp.gt.s32.totalorder %v18, 0
  %vm23 = vcmp.lt.s32.totalorder %v17, 15
  %vm24 = vcmp.lt.s32.totalorder %v18, 15
  %vm25 = vcmp.gt.s32.totalorder %v19, 0
  %vm26 = vcmp.gt.s32.totalorder %v20, 0
  %vm27 = vcmp.lt.s32.totalorder %v19, 15
  %vm28 = vcmp.lt.s32.totalorder %v20, 15
  %v29 = vsel %vm21, 1, 0
  %v30 = vsel %vm22, 1, 0
  %v31 = vcvt.s32.f32 %v29
  %v32 = vcvt.s32.f32 %v30
  %v33 = vadd.f32 %v31, 1.0
  %v34 = vadd.f32 %v32, 1.0
  %v35 = vsel %vm23, 1, 0
  %v36 = vsel %vm24, 1, 0
  %v37 = vcvt.s32.f32 %v35
  %v38 = vcvt.s32.f32 %v36
  %v39 = vadd.f32 %v33, %v37
  %v40 = vadd.f32 %v34, %v38
  %v41 = vsel %vm25, 1, 0
  %v42 = vsel %vm26, 1, 0
  %v43 = vcvt.s32.f32 %v41
  %v44 = vcvt.s32.f32 %v42
  %v45 = vadd.f32 %v43, 1.0
  %v46 = vadd.f32 %v44, 1.0
  %v47 = vsel %vm27, 1, 0
  %v48 = vsel %vm28, 1, 0
  %v49 = vcvt.s32.f32 %v47
  %v50 = vcvt.s32.f32 %v48
  %v51 = vadd.f32 %v45, %v49
  %v52 = vadd.f32 %v46, %v50
  %v53 = vmul.f32 %v39, %v51
  %v54 = vmul.f32 %v40, %v52
  %v55 = vrcp.pop %v53
  %v56 = vmul.f32 %v53, %v55
  %v57 = vsub.f32 1.0, %v56
  %v58 = vmul.f32 %v55, %v57
  %v59 = vadd.f32 %v55, %v58
  %vm60 = vweird.f32 %v53
  %vm61 = vweird.f32 %v55
  %vm62 = vmor %vm60, %vm61
  %v63 = vsel %vm62, %v55, %v59
  %v64 = vand.u32 2147483647, %v53
  %vm65 = vcmp.eq.f32.partialorder %v64, 8.507059e+37
  %v66 = vand.u32 %v53, 2147483648
  %v67 = vor.u32 1.1754944e-38, %v66
  %v68 = vsel %vm65, %v67, %v63
  %v69 = vmul.f32 1.0, %v68
  %v70 = vrcp.pop %v54
  %v71 = vmul.f32 %v54, %v70
  %v72 = vsub.f32 1.0, %v71
  %v73 = vmul.f32 %v70, %v72
  %v74 = vadd.f32 %v70, %v73
  %vm75 = vweird.f32 %v54
  %vm76 = vweird.f32 %v70
  %vm77 = vmor %vm75, %vm76
  %v78 = vsel %vm77, %v70, %v74
  %v79 = vand.u32 2147483647, %v54
  %vm80 = vcmp.eq.f32.partialorder %v79, 8.507059e+37
  %v81 = vand.u32 %v54, 2147483648
  %v82 = vor.u32 1.1754944e-38, %v81
  %v83 = vsel %vm80, %v82, %v78
  %v84 = vmul.f32 1.0, %v83
  %v85 = vld [vmem:[%s2] sm:$0xff]
  %v86 = vld [vmem:[%s2 + $0x8] sm:$0xff]
  %v87 = vld [vmem:[%s0] sm:$0xff]
  %v88 = vld [vmem:[%s0 + $0x8] sm:$0xff]
  %v89 = vld [vmem:[%s0 + $0x10] sm:$0xff]
  %v90 = vld [vmem:[%s0 + $0x18] sm:$0xff]
  %v91 = vld [vmem:[%s0 + $0x20] sm:$0xff]
  %v92 = vld [vmem:[%s0 + $0x28] sm:$0xff]
  %v93 = vld [vmem:[%s0 + $0x30] sm:$0xff]
  %v94 = vld [vmem:[%s0 + $0x38] sm:$0xff]
  %v95 = vmax.f32 %v87, 0.0
  %v96 = vmax.f32 %v88, 0.0
  %v97 = vmax.f32 %v89, 0.0
  %v98 = vmax.f32 %v90, 0.0
  %v99 = vmax.f32 %v91, 0.0
  %v100 = vmax.f32 %v92, 0.0
  %v101 = vmax.f32 %v93, 0.0
  %v102 = vmax.f32 %v94, 0.0
  %104 = vset.pattern.permute.xlu0 64
  %105 = vperm.xlu0 %104, %v85
  %v106 = vpop.permute.xlu0 %105
  %109 = vset.pattern.permute.xlu0 64
  %110 = vperm.xlu0 %109, %v86
  %v111 = vpop.permute.xlu0 %110
  %vm113 = vcmask 261120
  %v114 = vsel %vm113, %v85, 0
  %v116 = vsel %vm113, %v86, 0
  %118 = vmatpush.msra.mxu0 0.0
  %119 = vmatpush.msra.mxu0 0.0
  %120 = vmatpush.msra.mxu0 0.0
  %121 = vmatpush.msra.mxu0 0.0
  %122 = vmatpush.msra.mxu0 0.0
  %123 = vmatpush.msra.mxu0 0.0
  %124 = vmatpush.msra.mxu0 0.0
  %125 = vmatpush.msra.mxu0 0.0
  %126 = vmatpush.msra.mxu0 0.0
  %127 = vmatpush.msra.mxu0 0.0
  %128 = vmatpush.msra.mxu0 0.0
  %129 = vmatpush.msra.mxu0 0.0
  %130 = vmatpush.msra.mxu0 %v101
  %131 = vmatpush.msra.mxu0 %v99
  %132 = vmatpush.msra.mxu0 %v97
  %133 = vmatpush.msra.mxu0 %v95
  %134 = vmatmul.f32.gmra.mxu0 %v114
  %v135 = vpop.f32.mrf.mxu0
  %v136 = vadd.f32 %v106, %v135
  %137 = vmatmul.f32.gmra.mxu0 %v116
  %v138 = vpop.f32.mrf.mxu0
  %v139 = vadd.f32 %v111, %v138
  %140 = vdwg.mxu0
  %141 = vmatpush.msra.mxu0 0.0
  %142 = vmatpush.msra.mxu0 0.0
  %143 = vmatpush.msra.mxu0 0.0
  %144 = vmatpush.msra.mxu0 0.0
  %145 = vmatpush.msra.mxu0 0.0
  %146 = vmatpush.msra.mxu0 0.0
  %147 = vmatpush.msra.mxu0 0.0
  %148 = vmatpush.msra.mxu0 0.0
  %149 = vmatpush.msra.mxu0 0.0
  %150 = vmatpush.msra.mxu0 0.0
  %151 = vmatpush.msra.mxu0 0.0
  %152 = vmatpush.msra.mxu0 0.0
  %153 = vmatpush.msra.mxu0 %v102
  %154 = vmatpush.msra.mxu0 %v100
  %155 = vmatpush.msra.mxu0 %v98
  %156 = vmatpush.msra.mxu0 %v96
  %157 = vmatmul.f32.gmra.mxu0 %v114
  %v158 = vpop.f32.mrf.mxu0
  %v159 = vadd.f32 %v106, %v158
  %160 = vmatmul.f32.gmra.mxu0 %v116
  %v161 = vpop.f32.mrf.mxu0
  %v162 = vadd.f32 %v111, %v161
  %163 = vdwg.mxu0
  %v164 = vld [vmem:[%s1] sm:$0xff]
  %v165 = vld [vmem:[%s1 + $0x8] sm:$0xff]
  %v166 = vld [vmem:[%s1 + $0x10] sm:$0xff]
  %v167 = vld [vmem:[%s1 + $0x18] sm:$0xff]
  %v168 = vld [vmem:[%s1 + $0x20] sm:$0xff]
  %v169 = vld [vmem:[%s1 + $0x28] sm:$0xff]
  %v170 = vld [vmem:[%s1 + $0x30] sm:$0xff]
  %v171 = vld [vmem:[%s1 + $0x38] sm:$0xff]
  %v172 = vmax.f32 %v164, 0.0
  %v173 = vmax.f32 %v165, 0.0
  %v174 = vmax.f32 %v166, 0.0
  %v175 = vmax.f32 %v167, 0.0
  %v176 = vmax.f32 %v168, 0.0
  %v177 = vmax.f32 %v169, 0.0
  %v178 = vmax.f32 %v170, 0.0
  %v179 = vmax.f32 %v171, 0.0
  %180 = vset.pattern.permute.xlu0 65
  %181 = vperm.xlu0 %180, %v85
  %v182 = vpop.permute.xlu0 %181
  %184 = vset.pattern.permute.xlu0 65
  %185 = vperm.xlu0 %184, %v86
  %v186 = vpop.permute.xlu0 %185
  %188 = vrot.lane.b32.xlu0 %v85, 96
  %v189 = vpop.permute.xlu0 %188
  %190 = vrot.lane.b32.xlu0 %v86, 96
  %v191 = vpop.permute.xlu0 %190
  %v192 = vsel %vm113, %v189, 0
  %v194 = vsel %vm113, %v191, 0
  %196 = vmatpush.msra.mxu0 0.0
  %197 = vmatpush.msra.mxu0 0.0
  %198 = vmatpush.msra.mxu0 0.0
  %199 = vmatpush.msra.mxu0 0.0
  %200 = vmatpush.msra.mxu0 0.0
  %201 = vmatpush.msra.mxu0 0.0
  %202 = vmatpush.msra.mxu0 0.0
  %203 = vmatpush.msra.mxu0 0.0
  %204 = vmatpush.msra.mxu0 0.0
  %205 = vmatpush.msra.mxu0 0.0
  %206 = vmatpush.msra.mxu0 0.0
  %207 = vmatpush.msra.mxu0 0.0
  %208 = vmatpush.msra.mxu0 %v178
  %209 = vmatpush.msra.mxu0 %v176
  %210 = vmatpush.msra.mxu0 %v174
  %211 = vmatpush.msra.mxu0 %v172
  %212 = vmatmul.f32.gmra.mxu0 %v192
  %v213 = vpop.f32.mrf.mxu0
  %v214 = vadd.f32 %v182, %v213
  %215 = vmatmul.f32.gmra.mxu0 %v194
  %v216 = vpop.f32.mrf.mxu0
  %v217 = vadd.f32 %v186, %v216
  %218 = vdwg.mxu0
  %219 = vmatpush.msra.mxu0 0.0
  %220 = vmatpush.msra.mxu0 0.0
  %221 = vmatpush.msra.mxu0 0.0
  %222 = vmatpush.msra.mxu0 0.0
  %223 = vmatpush.msra.mxu0 0.0
  %224 = vmatpush.msra.mxu0 0.0
  %225 = vmatpush.msra.mxu0 0.0
  %226 = vmatpush.msra.mxu0 0.0
  %227 = vmatpush.msra.mxu0 0.0
  %228 = vmatpush.msra.mxu0 0.0
  %229 = vmatpush.msra.mxu0 0.0
  %230 = vmatpush.msra.mxu0 0.0
  %231 = vmatpush.msra.mxu0 %v179
  %232 = vmatpush.msra.mxu0 %v177
  %233 = vmatpush.msra.mxu0 %v175
  %234 = vmatpush.msra.mxu0 %v173
  %235 = vmatmul.f32.gmra.mxu0 %v192
  %v236 = vpop.f32.mrf.mxu0
  %v237 = vadd.f32 %v182, %v236
  %238 = vmatmul.f32.gmra.mxu0 %v194
  %v239 = vpop.f32.mrf.mxu0
  %v240 = vadd.f32 %v186, %v239
  %241 = vdwg.mxu0
  %242 = vrot.lane.b32.xlu0 %v214, 1
  %v243 = vpop.permute.xlu0 %242
  %244 = vrot.lane.b32.xlu0 %v217, 1
  %v245 = vpop.permute.xlu0 %244
  %246 = vrot.lane.b32.xlu0 %v237, 1
  %v247 = vpop.permute.xlu0 %246
  %248 = vrot.lane.b32.xlu0 %v240, 1
  %v249 = vpop.permute.xlu0 %248
  %vm250 = vcmp.lt.s32.totalorder %v15, 1
  %v251 = vsel %vm250, %v243, %v247
  %v252 = vsel %vm250, %v245, %v249
  %v253 = vsel %vm250, %v247, %v243
  %v254 = vsel %vm250, %v249, %v245
  %v255 = vsel %vm21, %v253, 0.0
  %v256 = vsel %vm22, %v251, 0.0
  %v257 = vsel %vm21, %v254, 0.0
  %v258 = vsel %vm22, %v252, 0.0
  %v259 = vadd.f32 %v214, %v255
  %v260 = vadd.f32 %v237, %v256
  %v261 = vadd.f32 %v217, %v257
  %v262 = vadd.f32 %v240, %v258
  %263 = vrot.lane.b32.xlu0 %v214, 127
  %v264 = vpop.permute.xlu0 %263
  %265 = vrot.lane.b32.xlu0 %v217, 127
  %v266 = vpop.permute.xlu0 %265
  %267 = vrot.lane.b32.xlu0 %v237, 127
  %v268 = vpop.permute.xlu0 %267
  %269 = vrot.lane.b32.xlu0 %v240, 127
  %v270 = vpop.permute.xlu0 %269
  %vm271 = vcmp.lt.s32.totalorder %v15, 127
  %v272 = vsel %vm271, %v264, %v268
  %v273 = vsel %vm271, %v266, %v270
  %v274 = vsel %vm271, %v268, %v264
  %v275 = vsel %vm271, %v270, %v266
  %v276 = vsel %vm23, %v272, 0.0
  %v277 = vsel %vm24, %v274, 0.0
  %v278 = vsel %vm23, %v273, 0.0
  %v279 = vsel %vm24, %v275, 0.0
  %v280 = vadd.f32 %v259, %v276
  %v281 = vadd.f32 %v260, %v277
  %v282 = vadd.f32 %v261, %v278
  %v283 = vadd.f32 %v262, %v279
  %284 = vrot.lane.b32.xlu0 %v280, 16
  %v285 = vpop.permute.xlu0 %284
  %286 = vrot.lane.b32.xlu0 %v282, 16
  %v287 = vpop.permute.xlu0 %286
  %288 = vrot.lane.b32.xlu0 %v281, 16
  %v289 = vpop.permute.xlu0 %288
  %290 = vrot.lane.b32.xlu0 %v283, 16
  %v291 = vpop.permute.xlu0 %290
  %vm292 = vcmp.lt.s32.totalorder %v15, 16
  %v293 = vsel %vm292, %v285, %v289
  %v294 = vsel %vm292, %v287, %v291
  %v295 = vsel %vm292, %v289, %v285
  %v296 = vsel %vm292, %v291, %v287
  %v297 = vsel %vm25, %v295, 0.0
  %v298 = vsel %vm26, %v293, 0.0
  %v299 = vsel %vm25, %v296, 0.0
  %v300 = vsel %vm26, %v294, 0.0
  %v301 = vadd.f32 %v280, %v297
  %v302 = vadd.f32 %v281, %v298
  %v303 = vadd.f32 %v282, %v299
  %v304 = vadd.f32 %v283, %v300
  %305 = vrot.lane.b32.xlu0 %v280, 112
  %v306 = vpop.permute.xlu0 %305
  %307 = vrot.lane.b32.xlu0 %v282, 112
  %v308 = vpop.permute.xlu0 %307
  %309 = vrot.lane.b32.xlu0 %v281, 112
  %v310 = vpop.permute.xlu0 %309
  %311 = vrot.lane.b32.xlu0 %v283, 112
  %v312 = vpop.permute.xlu0 %311
  %vm313 = vcmp.lt.s32.totalorder %v15, 112
  %v314 = vsel %vm313, %v306, %v310
  %v315 = vsel %vm313, %v308, %v312
  %v316 = vsel %vm313, %v310, %v306
  %v317 = vsel %vm313, %v312, %v308
  %v318 = vsel %vm27, %v314, 0.0
  %v319 = vsel %vm28, %v316, 0.0
  %v320 = vsel %vm27, %v315, 0.0
  %v321 = vsel %vm28, %v317, 0.0
  %v322 = vadd.f32 %v301, %v318
  %v323 = vadd.f32 %v302, %v319
  %v324 = vadd.f32 %v303, %v320
  %v325 = vadd.f32 %v304, %v321
  %v326 = vmul.f32 %v322, %v69
  %v327 = vmul.f32 %v323, %v84
  %v328 = vmul.f32 %v324, %v69
  %v329 = vmul.f32 %v325, %v84
  %v330 = vadd.f32 %v136, %v326
  %v331 = vadd.f32 %v159, %v327
  %v332 = vadd.f32 %v139, %v328
  %v333 = vadd.f32 %v162, %v329
  %334 = vrot.lane.b32.xlu0 %v136, 1
  %v335 = vpop.permute.xlu0 %334
  %336 = vrot.lane.b32.xlu0 %v139, 1
  %v337 = vpop.permute.xlu0 %336
  %338 = vrot.lane.b32.xlu0 %v159, 1
  %v339 = vpop.permute.xlu0 %338
  %340 = vrot.lane.b32.xlu0 %v162, 1
  %v341 = vpop.permute.xlu0 %340
  %v342 = vsel %vm250, %v335, %v339
  %v343 = vsel %vm250, %v337, %v341
  %v344 = vsel %vm250, %v339, %v335
  %v345 = vsel %vm250, %v341, %v337
  %v346 = vsel %vm21, %v344, -1e+30
  %v347 = vsel %vm22, %v342, -1e+30
  %v348 = vsel %vm21, %v345, -1e+30
  %v349 = vsel %vm22, %v343, -1e+30
  %350 = vrot.lane.b32.xlu0 %v136, 127
  %v351 = vpop.permute.xlu0 %350
  %352 = vrot.lane.b32.xlu0 %v139, 127
  %v353 = vpop.permute.xlu0 %352
  %354 = vrot.lane.b32.xlu0 %v159, 127
  %v355 = vpop.permute.xlu0 %354
  %356 = vrot.lane.b32.xlu0 %v162, 127
  %v357 = vpop.permute.xlu0 %356
  %v358 = vsel %vm271, %v351, %v355
  %v359 = vsel %vm271, %v353, %v357
  %v360 = vsel %vm271, %v355, %v351
  %v361 = vsel %vm271, %v357, %v353
  %v362 = vsel %vm23, %v358, -1e+30
  %v363 = vsel %vm24, %v360, -1e+30
  %v364 = vsel %vm23, %v359, -1e+30
  %v365 = vsel %vm24, %v361, -1e+30
  %v366 = vmax.f32 %v346, %v362
  %v367 = vmax.f32 %v347, %v363
  %v368 = vmax.f32 %v348, %v364
  %v369 = vmax.f32 %v349, %v365
  %v370 = vmax.f32 %v136, %v366
  %v371 = vmax.f32 %v159, %v367
  %v372 = vmax.f32 %v139, %v368
  %v373 = vmax.f32 %v162, %v369
  %374 = vrot.lane.b32.xlu0 %v370, 16
  %v375 = vpop.permute.xlu0 %374
  %376 = vrot.lane.b32.xlu0 %v372, 16
  %v377 = vpop.permute.xlu0 %376
  %378 = vrot.lane.b32.xlu0 %v371, 16
  %v379 = vpop.permute.xlu0 %378
  %380 = vrot.lane.b32.xlu0 %v373, 16
  %v381 = vpop.permute.xlu0 %380
  %v382 = vsel %vm292, %v375, %v379
  %v383 = vsel %vm292, %v377, %v381
  %v384 = vsel %vm292, %v379, %v375
  %v385 = vsel %vm292, %v381, %v377
  %v386 = vsel %vm25, %v384, -1e+30
  %v387 = vsel %vm26, %v382, -1e+30
  %v388 = vsel %vm25, %v385, -1e+30
  %v389 = vsel %vm26, %v383, -1e+30
  %390 = vrot.lane.b32.xlu0 %v370, 112
  %v391 = vpop.permute.xlu0 %390
  %392 = vrot.lane.b32.xlu0 %v372, 112
  %v393 = vpop.permute.xlu0 %392
  %394 = vrot.lane.b32.xlu0 %v371, 112
  %v395 = vpop.permute.xlu0 %394
  %396 = vrot.lane.b32.xlu0 %v373, 112
  %v397 = vpop.permute.xlu0 %396
  %v398 = vsel %vm313, %v391, %v395
  %v399 = vsel %vm313, %v393, %v397
  %v400 = vsel %vm313, %v395, %v391
  %v401 = vsel %vm313, %v397, %v393
  %v402 = vsel %vm27, %v398, -1e+30
  %v403 = vsel %vm28, %v400, -1e+30
  %v404 = vsel %vm27, %v399, -1e+30
  %v405 = vsel %vm28, %v401, -1e+30
  %v406 = vmax.f32 %v386, %v402
  %v407 = vmax.f32 %v387, %v403
  %v408 = vmax.f32 %v388, %v404
  %v409 = vmax.f32 %v389, %v405
  %v410 = vmax.f32 %v370, %v406
  %v411 = vmax.f32 %v371, %v407
  %v412 = vmax.f32 %v372, %v408
  %v413 = vmax.f32 %v373, %v409
  %v414 = vadd.f32 %v410, %v214
  %v415 = vadd.f32 %v411, %v237
  %v416 = vadd.f32 %v412, %v217
  %v417 = vadd.f32 %v413, %v240
  %418 = vrot.lane.b32.xlu0 %v330, 1
  %v419 = vpop.permute.xlu0 %418
  %420 = vrot.lane.b32.xlu0 %v332, 1
  %v421 = vpop.permute.xlu0 %420
  %422 = vrot.lane.b32.xlu0 %v331, 1
  %v423 = vpop.permute.xlu0 %422
  %424 = vrot.lane.b32.xlu0 %v333, 1
  %v425 = vpop.permute.xlu0 %424
  %v426 = vsel %vm250, %v419, %v423
  %v427 = vsel %vm250, %v421, %v425
  %v428 = vsel %vm250, %v423, %v419
  %v429 = vsel %vm250, %v425, %v421
  %v430 = vsel %vm21, %v428, 0.0
  %v431 = vsel %vm22, %v426, 0.0
  %v432 = vsel %vm21, %v429, 0.0
  %v433 = vsel %vm22, %v427, 0.0
  %v434 = vadd.f32 %v330, %v430
  %v435 = vadd.f32 %v331, %v431
  %v436 = vadd.f32 %v332, %v432
  %v437 = vadd.f32 %v333, %v433
  %438 = vrot.lane.b32.xlu0 %v330, 127
  %v439 = vpop.permute.xlu0 %438
  %440 = vrot.lane.b32.xlu0 %v332, 127
  %v441 = vpop.permute.xlu0 %440
  %442 = vrot.lane.b32.xlu0 %v331, 127
  %v443 = vpop.permute.xlu0 %442
  %444 = vrot.lane.b32.xlu0 %v333, 127
  %v445 = vpop.permute.xlu0 %444
  %v446 = vsel %vm271, %v439, %v443
  %v447 = vsel %vm271, %v441, %v445
  %v448 = vsel %vm271, %v443, %v439
  %v449 = vsel %vm271, %v445, %v441
  %v450 = vsel %vm23, %v446, 0.0
  %v451 = vsel %vm24, %v448, 0.0
  %v452 = vsel %vm23, %v447, 0.0
  %v453 = vsel %vm24, %v449, 0.0
  %v454 = vadd.f32 %v434, %v450
  %v455 = vadd.f32 %v435, %v451
  %v456 = vadd.f32 %v436, %v452
  %v457 = vadd.f32 %v437, %v453
  %458 = vrot.lane.b32.xlu0 %v454, 16
  %v459 = vpop.permute.xlu0 %458
  %460 = vrot.lane.b32.xlu0 %v456, 16
  %v461 = vpop.permute.xlu0 %460
  %462 = vrot.lane.b32.xlu0 %v455, 16
  %v463 = vpop.permute.xlu0 %462
  %464 = vrot.lane.b32.xlu0 %v457, 16
  %v465 = vpop.permute.xlu0 %464
  %v466 = vsel %vm292, %v459, %v463
  %v467 = vsel %vm292, %v461, %v465
  %v468 = vsel %vm292, %v463, %v459
  %v469 = vsel %vm292, %v465, %v461
  %v470 = vsel %vm25, %v468, 0.0
  %v471 = vsel %vm26, %v466, 0.0
  %v472 = vsel %vm25, %v469, 0.0
  %v473 = vsel %vm26, %v467, 0.0
  %v474 = vadd.f32 %v454, %v470
  %v475 = vadd.f32 %v455, %v471
  %v476 = vadd.f32 %v456, %v472
  %v477 = vadd.f32 %v457, %v473
  %478 = vrot.lane.b32.xlu0 %v454, 112
  %v479 = vpop.permute.xlu0 %478
  %480 = vrot.lane.b32.xlu0 %v456, 112
  %v481 = vpop.permute.xlu0 %480
  %482 = vrot.lane.b32.xlu0 %v455, 112
  %v483 = vpop.permute.xlu0 %482
  %484 = vrot.lane.b32.xlu0 %v457, 112
  %v485 = vpop.permute.xlu0 %484
  %v486 = vsel %vm313, %v479, %v483
  %v487 = vsel %vm313, %v481, %v485
  %v488 = vsel %vm313, %v483, %v479
  %v489 = vsel %vm313, %v485, %v481
  %v490 = vsel %vm27, %v486, 0.0
  %v491 = vsel %vm28, %v488, 0.0
  %v492 = vsel %vm27, %v487, 0.0
  %v493 = vsel %vm28, %v489, 0.0
  %v494 = vadd.f32 %v474, %v490
  %v495 = vadd.f32 %v475, %v491
  %v496 = vadd.f32 %v476, %v492
  %v497 = vadd.f32 %v477, %v493
  %v498 = vmul.f32 %v494, %v69
  %v499 = vmul.f32 %v495, %v84
  %v500 = vmul.f32 %v496, %v69
  %v501 = vmul.f32 %v497, %v84
  %v502 = vadd.f32 %v498, %v414
  %v503 = vadd.f32 %v499, %v415
  %v504 = vadd.f32 %v500, %v416
  %v505 = vadd.f32 %v501, %v417
  %v506 = vsel %vm21, %v428, -1e+30
  %v507 = vsel %vm22, %v426, -1e+30
  %v508 = vsel %vm21, %v429, -1e+30
  %v509 = vsel %vm22, %v427, -1e+30
  %v510 = vsel %vm23, %v446, -1e+30
  %v511 = vsel %vm24, %v448, -1e+30
  %v512 = vsel %vm23, %v447, -1e+30
  %v513 = vsel %vm24, %v449, -1e+30
  %v514 = vmax.f32 %v506, %v510
  %v515 = vmax.f32 %v507, %v511
  %v516 = vmax.f32 %v508, %v512
  %v517 = vmax.f32 %v509, %v513
  %v518 = vmax.f32 %v330, %v514
  %v519 = vmax.f32 %v331, %v515
  %v520 = vmax.f32 %v332, %v516
  %v521 = vmax.f32 %v333, %v517
  %522 = vrot.lane.b32.xlu0 %v518, 16
  %v523 = vpop.permute.xlu0 %522
  %524 = vrot.lane.b32.xlu0 %v520, 16
  %v525 = vpop.permute.xlu0 %524
  %526 = vrot.lane.b32.xlu0 %v519, 16
  %v527 = vpop.permute.xlu0 %526
  %528 = vrot.lane.b32.xlu0 %v521, 16
  %v529 = vpop.permute.xlu0 %528
  %v530 = vsel %vm292, %v523, %v527
  %v531 = vsel %vm292, %v525, %v529
  %v532 = vsel %vm292, %v527, %v523
  %v533 = vsel %vm292, %v529, %v525
  %v534 = vsel %vm25, %v532, -1e+30
  %v535 = vsel %vm26, %v530, -1e+30
  %v536 = vsel %vm25, %v533, -1e+30
  %v537 = vsel %vm26, %v531, -1e+30
  %538 = vrot.lane.b32.xlu0 %v518, 112
  %v539 = vpop.permute.xlu0 %538
  %540 = vrot.lane.b32.xlu0 %v520, 112
  %v541 = vpop.permute.xlu0 %540
  %542 = vrot.lane.b32.xlu0 %v519, 112
  %v543 = vpop.permute.xlu0 %542
  %544 = vrot.lane.b32.xlu0 %v521, 112
  %v545 = vpop.permute.xlu0 %544
  %v546 = vsel %vm313, %v539, %v543
  %v547 = vsel %vm313, %v541, %v545
  %v548 = vsel %vm313, %v543, %v539
  %v549 = vsel %vm313, %v545, %v541
  %v550 = vsel %vm27, %v546, -1e+30
  %v551 = vsel %vm28, %v548, -1e+30
  %v552 = vsel %vm27, %v547, -1e+30
  %v553 = vsel %vm28, %v549, -1e+30
  %v554 = vmax.f32 %v534, %v550
  %v555 = vmax.f32 %v535, %v551
  %v556 = vmax.f32 %v536, %v552
  %v557 = vmax.f32 %v537, %v553
  %v558 = vmax.f32 %v518, %v554
  %v559 = vmax.f32 %v519, %v555
  %v560 = vmax.f32 %v520, %v556
  %v561 = vmax.f32 %v521, %v557
  %562 = vrot.lane.b32.xlu0 %v502, 1
  %v563 = vpop.permute.xlu0 %562
  %564 = vrot.lane.b32.xlu0 %v504, 1
  %v565 = vpop.permute.xlu0 %564
  %566 = vrot.lane.b32.xlu0 %v503, 1
  %v567 = vpop.permute.xlu0 %566
  %568 = vrot.lane.b32.xlu0 %v505, 1
  %v569 = vpop.permute.xlu0 %568
  %v570 = vsel %vm250, %v563, %v567
  %v571 = vsel %vm250, %v565, %v569
  %v572 = vsel %vm250, %v567, %v563
  %v573 = vsel %vm250, %v569, %v565
  %v574 = vsel %vm21, %v572, 0.0
  %v575 = vsel %vm22, %v570, 0.0
  %v576 = vsel %vm21, %v573, 0.0
  %v577 = vsel %vm22, %v571, 0.0
  %v578 = vadd.f32 %v502, %v574
  %v579 = vadd.f32 %v503, %v575
  %v580 = vadd.f32 %v504, %v576
  %v581 = vadd.f32 %v505, %v577
  %582 = vrot.lane.b32.xlu0 %v502, 127
  %v583 = vpop.permute.xlu0 %582
  %584 = vrot.lane.b32.xlu0 %v504, 127
  %v585 = vpop.permute.xlu0 %584
  %586 = vrot.lane.b32.xlu0 %v503, 127
  %v587 = vpop.permute.xlu0 %586
  %588 = vrot.lane.b32.xlu0 %v505, 127
  %v589 = vpop.permute.xlu0 %588
  %v590 = vsel %vm271, %v583, %v587
  %v591 = vsel %vm271, %v585, %v589
  %v592 = vsel %vm271, %v587, %v583
  %v593 = vsel %vm271, %v589, %v585
  %v594 = vsel %vm23, %v590, 0.0
  %v595 = vsel %vm24, %v592, 0.0
  %v596 = vsel %vm23, %v591, 0.0
  %v597 = vsel %vm24, %v593, 0.0
  %v598 = vadd.f32 %v578, %v594
  %v599 = vadd.f32 %v579, %v595
  %v600 = vadd.f32 %v580, %v596
  %v601 = vadd.f32 %v581, %v597
  %602 = vrot.lane.b32.xlu0 %v598, 16
  %v603 = vpop.permute.xlu0 %602
  %604 = vrot.lane.b32.xlu0 %v600, 16
  %v605 = vpop.permute.xlu0 %604
  %606 = vrot.lane.b32.xlu0 %v599, 16
  %v607 = vpop.permute.xlu0 %606
  %608 = vrot.lane.b32.xlu0 %v601, 16
  %v609 = vpop.permute.xlu0 %608
  %v610 = vsel %vm292, %v603, %v607
  %v611 = vsel %vm292, %v605, %v609
  %v612 = vsel %vm292, %v607, %v603
  %v613 = vsel %vm292, %v609, %v605
  %v614 = vsel %vm25, %v612, 0.0
  %v615 = vsel %vm26, %v610, 0.0
  %v616 = vsel %vm25, %v613, 0.0
  %v617 = vsel %vm26, %v611, 0.0
  %v618 = vadd.f32 %v598, %v614
  %v619 = vadd.f32 %v599, %v615
  %v620 = vadd.f32 %v600, %v616
  %v621 = vadd.f32 %v601, %v617
  %622 = vrot.lane.b32.xlu0 %v598, 112
  %v623 = vpop.permute.xlu0 %622
  %624 = vrot.lane.b32.xlu0 %v600, 112
  %v625 = vpop.permute.xlu0 %624
  %626 = vrot.lane.b32.xlu0 %v599, 112
  %v627 = vpop.permute.xlu0 %626
  %628 = vrot.lane.b32.xlu0 %v601, 112
  %v629 = vpop.permute.xlu0 %628
  %v630 = vsel %vm313, %v623, %v627
  %v631 = vsel %vm313, %v625, %v629
  %v632 = vsel %vm313, %v627, %v623
  %v633 = vsel %vm313, %v629, %v625
  %v634 = vsel %vm27, %v630, 0.0
  %v635 = vsel %vm28, %v632, 0.0
  %v636 = vsel %vm27, %v631, 0.0
  %v637 = vsel %vm28, %v633, 0.0
  %v638 = vadd.f32 %v618, %v634
  %v639 = vadd.f32 %v619, %v635
  %v640 = vadd.f32 %v620, %v636
  %v641 = vadd.f32 %v621, %v637
  %v642 = vmul.f32 %v638, %v69
  %v643 = vmul.f32 %v639, %v84
  %v644 = vmul.f32 %v640, %v69
  %v645 = vmul.f32 %v641, %v84
  %v646 = vadd.f32 %v558, %v642
  %v647 = vadd.f32 %v559, %v643
  %v648 = vadd.f32 %v560, %v644
  %v649 = vadd.f32 %v561, %v645
  %650 = vst [vmem:[%s3] sm:$0xff] %v330
  %651 = vst [vmem:[%s3 + $0x8] sm:$0xff] %v331
  %652 = vst [vmem:[%s3 + $0x10] sm:$0xff] %v414
  %653 = vst [vmem:[%s3 + $0x18] sm:$0xff] %v415
  %654 = vst [vmem:[%s3 + $0x20] sm:$0xff] %v502
  %655 = vst [vmem:[%s3 + $0x28] sm:$0xff] %v503
  %656 = vst [vmem:[%s3 + $0x30] sm:$0xff] %v646
  %657 = vst [vmem:[%s3 + $0x38] sm:$0xff] %v647
  %658 = vst [vmem:[%s3 + $0x40] sm:$0xff] %v332
  %659 = vst [vmem:[%s3 + $0x48] sm:$0xff] %v333
  %660 = vst [vmem:[%s3 + $0x50] sm:$0xff] %v416
  %661 = vst [vmem:[%s3 + $0x58] sm:$0xff] %v417
  %662 = vst [vmem:[%s3 + $0x60] sm:$0xff] %v504
  %663 = vst [vmem:[%s3 + $0x68] sm:$0xff] %v505
  %664 = vst [vmem:[%s3 + $0x70] sm:$0xff] %v648
  %665 = vst [vmem:[%s3 + $0x78] sm:$0xff] %v649
  // Predicated region
  $region14: #{_lambda_.1} parent=0 // pred_check
    _
  $region15: #{_lambda_.1} parent=0 // pred_check_branch
    %667 = sbr.rel (0) target = $region17
  $region16: #{_lambda_.1} parent=0 // pred_region
    _
  $region17: #{_lambda_.1} parent=0 // pred_fallthru
    _
  // Predicated region
  $region18: #{_lambda_.1} parent=0 // pred_check
    _
  $region19: #{_lambda_.1} parent=0 // pred_check_branch
    %669 = sbr.rel (0) target = $region21
  $region20: #{_lambda_.1} parent=0 // pred_region
    _
  $region21: #{_lambda_.1} parent=0 // pred_fallthru
    _

</llo_original>
